<compile_context>
chip_gen: v5e
topology: v5e:2x2
jax: 0.10.0
libtpu: 0.0.40
codegen_flags: <defaults>
</compile_context>

<pallas_src>
import jax
import jax.numpy as jnp
from jax import lax
from jax.experimental import pallas as pl
from jax.experimental.pallas import tpu as pltpu


def _round_up(x, m):
    return ((x + m - 1) // m) * m


def _pad_rows(x, rows):
    if x.shape[0] == rows:
        return x
    pad = [(0, rows - x.shape[0])] + [(0, 0)] * (x.ndim - 1)
    return jnp.pad(x, pad)


# ---------------------------------------------------------------------------
# Fused kernel: one-hot MXU gather + multiply + f32 sublane-reduce.
# Batch lives on the lane axis -> lane-dense (1, tb) output store.
# ---------------------------------------------------------------------------
def _mf_fused_kernel(table_t_ref, p1_ref, p2_ref, out_ref):
    table_t = table_t_ref[...].astype(jnp.float32)              # (D, E), VMEM-resident
    E = table_t.shape[1]
    tb = p1_ref.shape[1]
    row_ids = lax.broadcasted_iota(jnp.int32, (E, tb), 0)       # (E, tb)
    # Exact row gather via one-hot matmul (multiplies by 1.0/0.0, f32
    # accumulate of zeros => bit-exact gather) on the otherwise-idle MXU.
    oh1 = (row_ids == p1_ref[...]).astype(jnp.float32)          # (E, tb)
    oh2 = (row_ids == p2_ref[...]).astype(jnp.float32)          # (E, tb)
    e1t = jnp.dot(table_t, oh1, preferred_element_type=jnp.float32)  # (D, tb)
    e2t = jnp.dot(table_t, oh2, preferred_element_type=jnp.float32)  # (D, tb)
    # f32 accumulate matches torch.sum(..., dtype=torch.float)
    out_ref[...] = jnp.sum(e1t * e2t, axis=0, keepdims=True)    # (1, tb), lane-dense


# ---------------------------------------------------------------------------
# Fallback kernel (table too big for VMEM): pre-gathered rows, big batch tile.
# ---------------------------------------------------------------------------
def _mf_dot_kernel(e1_ref, e2_ref, out_ref):
    p = e1_ref[...].astype(jnp.float32) * e2_ref[...].astype(jnp.float32)
    out_ref[...] = jnp.sum(p, axis=-1, keepdims=True)


def mf_forward(embedding, product1, product2, *, tb_target=512,
               force_pregather=False):
    """MFContinuous.forward: (B,) float32 interaction scores.

    embedding: (emb_size, emb_dim) table (f32 or bf16 — upcast happens in-kernel)
    product1 / product2: (B,) integer indices
    """
    assert tb_target % 128 == 0
    E, D = embedding.shape
    B = product1.shape[0]
    itemsize = jnp.dtype(embedding.dtype).itemsize
    table_bytes = E * D * itemsize

    use_fused = (not force_pregather) and (table_bytes <= 4 * 2**20) and (E <= 2048)

    if use_fused:
        # Batch tile: lane-dense (multiple of 128), large enough to amortize the
        # ~600-cycle per-step pipeline overhead, small enough that the f32
        # one-hots + gathered rows stay well inside VMEM (incl. v7x's 64 MiB).
        tb = min(tb_target, _round_up(B, 128))
        while tb > 128 and (2 * E * tb * 4 + 3 * D * tb * 4) > 8 * 2**20:
            tb //= 2
        padded_b = _round_up(B, tb)

        table_t = embedding.T                                    # (D, E), one-time
        p1 = jnp.zeros((1, padded_b), jnp.int32).at[0, :B].set(
            product1.astype(jnp.int32))
        p2 = jnp.zeros((1, padded_b), jnp.int32).at[0, :B].set(
            product2.astype(jnp.int32))

        # Rough per-step VMEM footprint: table buffers + in-kernel f32 copy +
        # one-hots + gathered rows + product + index/output blocks.
        est = (2 * table_bytes + E * D * 4 + 2 * E * tb * 4
               + 3 * D * tb * 4 + 6 * tb * 4)
        cp_kwargs = {"dimension_semantics": ("parallel",)}
        if est > 14 * 2**20:   # above v5e's 16 MiB scoped default -> raise it
            cp_kwargs["vmem_limit_bytes"] = int(min(est + 4 * 2**20, 48 * 2**20))

        out = pl.pallas_call(
            _mf_fused_kernel,
            out_shape=jax.ShapeDtypeStruct((1, padded_b), jnp.float32),
            grid_spec=pltpu.PrefetchScalarGridSpec(
                num_scalar_prefetch=0,
                grid=(padded_b // tb,),
                in_specs=[
                    pl.BlockSpec((D, E), lambda i: (0, 0)),      # table^T: resident
                    pl.BlockSpec((1, tb), lambda i: (0, i)),     # product1 tile
                    pl.BlockSpec((1, tb), lambda i: (0, i)),     # product2 tile
                ],
                out_specs=pl.BlockSpec((1, tb), lambda i: (0, i)),
            ),
            compiler_params=pltpu.CompilerParams(**cp_kwargs),
        )(table_t, p1, p2)
        return out[0, :B]

    # ----- fallback: large table -> gather in XLA, big-tile reduce kernel -----
    # TODO(synk): for very large tables, a manual double-buffered DMA row gather
    # (memory_space=pl.ANY + scalar-prefetched indices) would avoid the e1/e2
    # HBM round trip as well.
    e1 = jnp.take(embedding, product1.astype(jnp.int32), axis=0)
    e2 = jnp.take(embedding, product2.astype(jnp.int32), axis=0)

    tb = min(2048, _round_up(B, 8))
    # keep 2 inputs x 2 pipeline buffers x tile well inside scoped VMEM
    while tb > 8 and 4 * tb * D * itemsize > 8 * 2**20:
        tb //= 2
    padded_b = _round_up(B, tb)
    e1 = _pad_rows(e1, padded_b)
    e2 = _pad_rows(e2, padded_b)

    out = pl.pallas_call(
        _mf_dot_kernel,
        out_shape=jax.ShapeDtypeStruct((padded_b, 1), jnp.float32),
        grid_spec=pltpu.PrefetchScalarGridSpec(
            num_scalar_prefetch=0,
            grid=(padded_b // tb,),
            in_specs=[
                pl.BlockSpec((tb, D), lambda i: (i, 0)),
                pl.BlockSpec((tb, D), lambda i: (i, 0)),
            ],
            out_specs=pl.BlockSpec((tb, 1), lambda i: (i, 0)),
        ),
        compiler_params=pltpu.CompilerParams(
            dimension_semantics=("parallel",)),
    )(e1, e2)
    return out[:B, 0]


if __name__ == "__main__":
    emb_size, emb_dim, batch = 64, 128, 16

    key = jax.random.PRNGKey(0)
    k_emb, k_p1, k_p2 = jax.random.split(key, 3)

    # nn.Embedding default init: N(0, 1)
    embedding = jax.random.normal(k_emb, (emb_size, emb_dim), dtype=jnp.float32)
    product1 = jax.random.randint(k_p1, (batch,), 0, emb_size, dtype=jnp.int32)
    product2 = jax.random.randint(k_p2, (batch,), 0, emb_size, dtype=jnp.int32)

    def ref_forward(p1, p2):
        e1 = embedding[p1]
        e2 = embedding[p2]
        return jnp.sum(e1 * e2, axis=1).astype(jnp.float32)

    # fused (gather-in-kernel, lane-dense output) path
    out = jax.block_until_ready(mf_forward(embedding, product1, product2))
    assert out.shape == (batch,) and out.dtype == jnp.float32
    assert jnp.allclose(out, ref_forward(product1, product2), atol=1e-4, rtol=1e-5)

    # ragged batch (exercises padding / tile selection)
    p1r, p2r = product1[:13], product2[:13]
    out_r = jax.block_until_ready(mf_forward(embedding, p1r, p2r))
    assert out_r.shape == (13,)
    assert jnp.allclose(out_r, ref_forward(p1r, p2r), atol=1e-4, rtol=1e-5)

    # big-table fallback path (wrapper gather + big-tile reduce kernel)
    out_f = jax.block_until_ready(
        mf_forward(embedding, product1, product2, force_pregather=True))
    assert jnp.allclose(out_f, ref_forward(product1, product2), atol=1e-4, rtol=1e-5)

    print("KERNEL_OK")
</pallas_src>

<mosaic_0001>
module attributes {stable_mosaic.version = 11 : i64} {
  func.func @_mf_fused_kernel(%arg0: i32, %arg1: memref<128x64xf32, #tpu.memory_space<vmem>>, %arg2: memref<1x128xi32, #tpu.memory_space<vmem>>, %arg3: memref<1x128xi32, #tpu.memory_space<vmem>>, %arg4: memref<1x128xf32, #tpu.memory_space<vmem>>) attributes {dimension_semantics = [#tpu.dimension_semantics<parallel>], iteration_bounds = array<i64: 1>, scalar_prefetch = 0 : i64, scratch_operands = 0 : i64, tpu.core_type = #tpu.core_type<tc>, window_params = [{pipeline_mode = #tpu.pipeline_mode<synchronous>, transform_indices = @transform_0, window_bounds = array<i64: 128, 64>}, {transform_indices = @transform_1, window_bounds = array<i64: 1, 128>}, {transform_indices = @transform_2, window_bounds = array<i64: 1, 128>}, {transform_indices = @transform_3, window_bounds = array<i64: 1, 128>}]} {
    %c0 = arith.constant 0 : index
    %c0_0 = arith.constant 0 : index
    %0 = vector.load %arg1[%c0, %c0_0] : memref<128x64xf32, #tpu.memory_space<vmem>>, vector<128x64xf32>
    %1 = tpu.iota {dimensions = array<i32: 0>} : vector<64x128xi32>
    %c0_1 = arith.constant 0 : index
    %c0_2 = arith.constant 0 : index
    %2 = vector.load %arg2[%c0_1, %c0_2] : memref<1x128xi32, #tpu.memory_space<vmem>>, vector<1x128xi32>
    %3 = vector.broadcast %2 : vector<1x128xi32> to vector<64x128xi32>
    %4 = arith.cmpi eq, %1, %3 : vector<64x128xi32>
    %5 = arith.extui %4 : vector<64x128xi1> to vector<64x128xi32>
    %6 = arith.sitofp %5 : vector<64x128xi32> to vector<64x128xf32>
    %c0_3 = arith.constant 0 : index
    %c0_4 = arith.constant 0 : index
    %7 = vector.load %arg3[%c0_3, %c0_4] : memref<1x128xi32, #tpu.memory_space<vmem>>, vector<1x128xi32>
    %8 = vector.broadcast %7 : vector<1x128xi32> to vector<64x128xi32>
    %9 = arith.cmpi eq, %1, %8 : vector<64x128xi32>
    %10 = arith.extui %9 : vector<64x128xi1> to vector<64x128xi32>
    %11 = arith.sitofp %10 : vector<64x128xi32> to vector<64x128xf32>
    %cst = arith.constant dense<0.000000e+00> : vector<128x128xf32>
    %12 = tpu.matmul %0, %6, %cst {dimension_numbers = #tpu.dot_dimension_numbers<[1], [0], [0], [1], [0, 0, 1, 1], [], []>} : vector<128x64xf32>, vector<64x128xf32>, vector<128x128xf32> -> vector<128x128xf32>
    %cst_5 = arith.constant dense<0.000000e+00> : vector<128x128xf32>
    %13 = tpu.matmul %0, %11, %cst_5 {dimension_numbers = #tpu.dot_dimension_numbers<[1], [0], [0], [1], [0, 0, 1, 1], [], []>} : vector<128x64xf32>, vector<64x128xf32>, vector<128x128xf32> -> vector<128x128xf32>
    %14 = arith.mulf %12, %13 : vector<128x128xf32>
    %cst_6 = arith.constant dense<0.000000e+00> : vector<128xf32>
    %15 = vector.multi_reduction <add>, %14, %cst_6 [0] : vector<128x128xf32> to vector<128xf32>
    %16 = vector.shape_cast %15 : vector<128xf32> to vector<1x128xf32>
    %c0_7 = arith.constant 0 : index
    %c0_8 = arith.constant 0 : index
    %17 = vector.load %arg4[%c0_7, %c0_8] : memref<1x128xf32, #tpu.memory_space<vmem>>, vector<1x128xf32>
    tpu.vector_store %arg4[%c0_7, %c0_8], %16 {strides = array<i32>} : memref<1x128xf32, #tpu.memory_space<vmem>>, vector<1x128xf32>,
    return
  }
  func.func @transform_0(%arg0: i32) -> (i32, i32) {
    %c0_i32 = arith.constant 0 : i32
    %c0_i32_0 = arith.constant 0 : i32
    %c0_i32_1 = arith.constant 0 : i32
    return %c0_i32, %c0_i32_0 : i32, i32
  }
  func.func @transform_1(%arg0: i32) -> (i32, i32) {
    %c0_i32 = arith.constant 0 : i32
    %c0_i32_0 = arith.constant 0 : i32
    return %c0_i32, %arg0 : i32, i32
  }
  func.func @transform_2(%arg0: i32) -> (i32, i32) {
    %c0_i32 = arith.constant 0 : i32
    %c0_i32_0 = arith.constant 0 : i32
    return %c0_i32, %arg0 : i32, i32
  }
  func.func @transform_3(%arg0: i32) -> (i32, i32) {
    %c0_i32 = arith.constant 0 : i32
    %c0_i32_0 = arith.constant 0 : i32
    return %c0_i32, %arg0 : i32, i32
  }
}

</mosaic_0001>

<llo_original>
// kernel: tpu_custom_call.1
$region0: #{tpu_custom_call.1}
  #allocation0 [shape = 'u32[]', space=smem, size = 0x4, offset = 0x4, fixed_abs, tag = 'smem constant byte address 0x4 - core index']
  #allocation1 [shape = 'u32[72,128]{1,0:T(1,128)}', space=vmem, size = 0x9000, scoped, tag = 'internal scratch']
  %s0 = inlined_call_operand.vmem [shape: f32[128,64], index: 0, kind: input, shape index: {}]
  %s1 = inlined_call_operand.vmem [shape: s32[1,128], index: 1, kind: input, shape index: {}]
  %s2 = inlined_call_operand.vmem [shape: s32[1,128], index: 2, kind: input, shape index: {}]
  %s3 = inlined_call_operand.hbm [shape: f32[1,128], index: 3, kind: output, shape index: {}]
  %s4 = sld [smem:[#allocation0]]
  $region22: #{tpu_custom_call.1} parent=0
    _
  %s6 = ssub.s32 1, %s4
  %s7 = scalar_select 0, %s6, %s4
  $region1: #{tpu_custom_call.1} parent=0
    #allocation2 [shape = 'u8[512]{0}', space=vmem, size = 0x400, scoped, tag = 'output window, operand 0, single buffered']
    #allocation3 [shape = 's32[1]{0}', space=sflag, size = 0x4, scoped, tag = 'scoped memory for tpu_custom_call.1']
    %8 = vsyncpa [#allocation3], 0
    // Predicated region
    $region2: #{tpu_custom_call.1} parent=1 // pred_check
      _
    $region3: #{tpu_custom_call.1} parent=1 // pred_check_branch
      %10 = sbr.rel (0) target = $region5
    $region4: #{tpu_custom_call.1} parent=1 // pred_region
      _
    $region5: #{tpu_custom_call.1} parent=1 // pred_fallthru
      _
    // Predicated region
    $region6: #{tpu_custom_call.1} parent=1 // pred_check
      _
    $region7: #{tpu_custom_call.1} parent=1 // pred_check_branch
      %12 = sbr.rel (0) target = $region9
    $region8: #{tpu_custom_call.1} parent=1 // pred_region
      _
    $region9: #{tpu_custom_call.1} parent=1 // pred_fallthru
      _
    // Predicated region
    $region10: #{tpu_custom_call.1} parent=1 // pred_check
      _
    $region11: #{tpu_custom_call.1} parent=1 // pred_check_branch
      %14 = sbr.rel (0) target = $region13
    $region12: #{tpu_custom_call.1} parent=1 // pred_region
      _
    $region13: #{tpu_custom_call.1} parent=1 // pred_fallthru
      _
    %v15 = vld [vmem:[%s0] sm:$0xff]
    %v16 = vld [vmem:[%s0 + $0x8] sm:$0xff]
    %v17 = vld [vmem:[%s0 + $0x10] sm:$0xff]
    %v18 = vld [vmem:[%s0 + $0x18] sm:$0xff]
    %v19 = vld [vmem:[%s0 + $0x20] sm:$0xff]
    %v20 = vld [vmem:[%s0 + $0x28] sm:$0xff]
    %v21 = vld [vmem:[%s0 + $0x30] sm:$0xff]
    %v22 = vld [vmem:[%s0 + $0x38] sm:$0xff]
    %v23 = vld [vmem:[%s0 + $0x40] sm:$0xff]
    %v24 = vld [vmem:[%s0 + $0x48] sm:$0xff]
    %v25 = vld [vmem:[%s0 + $0x50] sm:$0xff]
    %v26 = vld [vmem:[%s0 + $0x58] sm:$0xff]
    %v27 = vld [vmem:[%s0 + $0x60] sm:$0xff]
    %v28 = vld [vmem:[%s0 + $0x68] sm:$0xff]
    %v29 = vld [vmem:[%s0 + $0x70] sm:$0xff]
    %v30 = vld [vmem:[%s0 + $0x78] sm:$0xff]
    %v31 = vlaneseq
    %v32 = vshrl.u32 %v31, 7
    %v33 = vadd.s32 %v32, 8
    %v34 = vadd.s32 %v32, 16
    %v35 = vadd.s32 %v32, 24
    %v36 = vadd.s32 %v32, 32
    %v37 = vadd.s32 %v32, 40
    %v38 = vadd.s32 %v32, 48
    %v39 = vadd.s32 %v32, 56
    %v40 = vld [vmem:[%s1] sm:$0x1]
    %v41 = vperm.slane %v40, 0
    %vm42 = vcmp.eq.s32.totalorder %v32, %v41
    %vm43 = vcmp.eq.s32.totalorder %v33, %v41
    %vm44 = vcmp.eq.s32.totalorder %v34, %v41
    %vm45 = vcmp.eq.s32.totalorder %v35, %v41
    %vm46 = vcmp.eq.s32.totalorder %v36, %v41
    %vm47 = vcmp.eq.s32.totalorder %v37, %v41
    %vm48 = vcmp.eq.s32.totalorder %v38, %v41
    %vm49 = vcmp.eq.s32.totalorder %v39, %v41
    %v50 = vsel %vm42, 1, 0
    %v51 = vsel %vm43, 1, 0
    %v52 = vsel %vm44, 1, 0
    %v53 = vsel %vm45, 1, 0
    %v54 = vsel %vm46, 1, 0
    %v55 = vsel %vm47, 1, 0
    %v56 = vsel %vm48, 1, 0
    %v57 = vsel %vm49, 1, 0
    %v58 = vcvt.s32.f32 %v50
    %v59 = vcvt.s32.f32 %v51
    %v60 = vcvt.s32.f32 %v52
    %v61 = vcvt.s32.f32 %v53
    %v62 = vcvt.s32.f32 %v54
    %v63 = vcvt.s32.f32 %v55
    %v64 = vcvt.s32.f32 %v56
    %v65 = vcvt.s32.f32 %v57
    %v66 = vld [vmem:[%s2] sm:$0x1]
    %v67 = vperm.slane %v66, 0
    %vm68 = vcmp.eq.s32.totalorder %v32, %v67
    %vm69 = vcmp.eq.s32.totalorder %v33, %v67
    %vm70 = vcmp.eq.s32.totalorder %v34, %v67
    %vm71 = vcmp.eq.s32.totalorder %v35, %v67
    %vm72 = vcmp.eq.s32.totalorder %v36, %v67
    %vm73 = vcmp.eq.s32.totalorder %v37, %v67
    %vm74 = vcmp.eq.s32.totalorder %v38, %v67
    %vm75 = vcmp.eq.s32.totalorder %v39, %v67
    %v76 = vsel %vm68, 1, 0
    %v77 = vsel %vm69, 1, 0
    %v78 = vsel %vm70, 1, 0
    %v79 = vsel %vm71, 1, 0
    %v80 = vsel %vm72, 1, 0
    %v81 = vsel %vm73, 1, 0
    %v82 = vsel %vm74, 1, 0
    %v83 = vsel %vm75, 1, 0
    %v84 = vcvt.s32.f32 %v76
    %v85 = vcvt.s32.f32 %v77
    %v86 = vcvt.s32.f32 %v78
    %v87 = vcvt.s32.f32 %v79
    %v88 = vcvt.s32.f32 %v80
    %v89 = vcvt.s32.f32 %v81
    %v90 = vcvt.s32.f32 %v82
    %v91 = vcvt.s32.f32 %v83
    %vm92 = vcmask 523264
    %v94 = vsel %vm92, %v15, 0
    %v97 = vsel %vm92, %v16, 0
    %v100 = vsel %vm92, %v17, 0
    %v103 = vsel %vm92, %v18, 0
    %v106 = vsel %vm92, %v19, 0
    %v109 = vsel %vm92, %v20, 0
    %v112 = vsel %vm92, %v21, 0
    %v115 = vsel %vm92, %v22, 0
    %v118 = vsel %vm92, %v23, 0
    %v121 = vsel %vm92, %v24, 0
    %v124 = vsel %vm92, %v25, 0
    %v127 = vsel %vm92, %v26, 0
    %v130 = vsel %vm92, %v27, 0
    %v133 = vsel %vm92, %v28, 0
    %v136 = vsel %vm92, %v29, 0
    %v139 = vsel %vm92, %v30, 0
    %141 = vmatpush.msra.mxu0 0.0
    %142 = vmatpush.msra.mxu0 0.0
    %143 = vmatpush.msra.mxu0 0.0
    %144 = vmatpush.msra.mxu0 0.0
    %145 = vmatpush.msra.mxu0 0.0
    %146 = vmatpush.msra.mxu0 0.0
    %147 = vmatpush.msra.mxu0 0.0
    %148 = vmatpush.msra.mxu0 0.0
    %149 = vmatpush.msra.mxu0 %v65
    %150 = vmatpush.msra.mxu0 %v64
    %151 = vmatpush.msra.mxu0 %v63
    %152 = vmatpush.msra.mxu0 %v62
    %153 = vmatpush.msra.mxu0 %v61
    %154 = vmatpush.msra.mxu0 %v60
    %155 = vmatpush.msra.mxu0 %v59
    %156 = vmatpush.msra.mxu0 %v58
    %157 = vmatmul.f32.gmra.mxu0 %v94
    %v158 = vpop.f32.mrf.mxu0
    %v159 = vadd.f32 0.0, %v158
    %160 = vmatmul.f32.gmra.mxu0 %v97
    %v161 = vpop.f32.mrf.mxu0
    %v162 = vadd.f32 0.0, %v161
    %163 = vmatmul.f32.gmra.mxu0 %v100
    %v164 = vpop.f32.mrf.mxu0
    %v165 = vadd.f32 0.0, %v164
    %166 = vmatmul.f32.gmra.mxu0 %v103
    %v167 = vpop.f32.mrf.mxu0
    %v168 = vadd.f32 0.0, %v167
    %169 = vmatmul.f32.gmra.mxu0 %v106
    %v170 = vpop.f32.mrf.mxu0
    %v171 = vadd.f32 0.0, %v170
    %172 = vmatmul.f32.gmra.mxu0 %v109
    %v173 = vpop.f32.mrf.mxu0
    %v174 = vadd.f32 0.0, %v173
    %175 = vmatmul.f32.gmra.mxu0 %v112
    %v176 = vpop.f32.mrf.mxu0
    %v177 = vadd.f32 0.0, %v176
    %178 = vmatmul.f32.gmra.mxu0 %v115
    %v179 = vpop.f32.mrf.mxu0
    %v180 = vadd.f32 0.0, %v179
    %181 = vmatmul.f32.gmra.mxu0 %v118
    %v182 = vpop.f32.mrf.mxu0
    %v183 = vadd.f32 0.0, %v182
    %184 = vmatmul.f32.gmra.mxu0 %v121
    %v185 = vpop.f32.mrf.mxu0
    %v186 = vadd.f32 0.0, %v185
    %187 = vmatmul.f32.gmra.mxu0 %v124
    %v188 = vpop.f32.mrf.mxu0
    %v189 = vadd.f32 0.0, %v188
    %190 = vmatmul.f32.gmra.mxu0 %v127
    %v191 = vpop.f32.mrf.mxu0
    %v192 = vadd.f32 0.0, %v191
    %193 = vmatmul.f32.gmra.mxu0 %v130
    %v194 = vpop.f32.mrf.mxu0
    %v195 = vadd.f32 0.0, %v194
    %196 = vmatmul.f32.gmra.mxu0 %v133
    %v197 = vpop.f32.mrf.mxu0
    %v198 = vadd.f32 0.0, %v197
    %199 = vmatmul.f32.gmra.mxu0 %v136
    %v200 = vpop.f32.mrf.mxu0
    %v201 = vadd.f32 0.0, %v200
    %202 = vmatmul.f32.gmra.mxu0 %v139
    %v203 = vpop.f32.mrf.mxu0
    %v204 = vadd.f32 0.0, %v203
    %205 = vdwg.mxu0
    %206 = vmatpush.msra.mxu0 0.0
    %207 = vmatpush.msra.mxu0 0.0
    %208 = vmatpush.msra.mxu0 0.0
    %209 = vmatpush.msra.mxu0 0.0
    %210 = vmatpush.msra.mxu0 0.0
    %211 = vmatpush.msra.mxu0 0.0
    %212 = vmatpush.msra.mxu0 0.0
    %213 = vmatpush.msra.mxu0 0.0
    %214 = vmatpush.msra.mxu0 %v91
    %215 = vmatpush.msra.mxu0 %v90
    %216 = vmatpush.msra.mxu0 %v89
    %217 = vmatpush.msra.mxu0 %v88
    %218 = vmatpush.msra.mxu0 %v87
    %219 = vmatpush.msra.mxu0 %v86
    %220 = vmatpush.msra.mxu0 %v85
    %221 = vmatpush.msra.mxu0 %v84
    %222 = vmatmul.f32.gmra.mxu0 %v94
    %v223 = vpop.f32.mrf.mxu0
    %v224 = vadd.f32 0.0, %v223
    %225 = vmatmul.f32.gmra.mxu0 %v97
    %v226 = vpop.f32.mrf.mxu0
    %v227 = vadd.f32 0.0, %v226
    %228 = vmatmul.f32.gmra.mxu0 %v100
    %v229 = vpop.f32.mrf.mxu0
    %v230 = vadd.f32 0.0, %v229
    %231 = vmatmul.f32.gmra.mxu0 %v103
    %v232 = vpop.f32.mrf.mxu0
    %v233 = vadd.f32 0.0, %v232
    %234 = vmatmul.f32.gmra.mxu0 %v106
    %v235 = vpop.f32.mrf.mxu0
    %v236 = vadd.f32 0.0, %v235
    %237 = vmatmul.f32.gmra.mxu0 %v109
    %v238 = vpop.f32.mrf.mxu0
    %v239 = vadd.f32 0.0, %v238
    %240 = vmatmul.f32.gmra.mxu0 %v112
    %v241 = vpop.f32.mrf.mxu0
    %v242 = vadd.f32 0.0, %v241
    %243 = vmatmul.f32.gmra.mxu0 %v115
    %v244 = vpop.f32.mrf.mxu0
    %v245 = vadd.f32 0.0, %v244
    %246 = vmatmul.f32.gmra.mxu0 %v118
    %v247 = vpop.f32.mrf.mxu0
    %v248 = vadd.f32 0.0, %v247
    %249 = vmatmul.f32.gmra.mxu0 %v121
    %v250 = vpop.f32.mrf.mxu0
    %v251 = vadd.f32 0.0, %v250
    %252 = vmatmul.f32.gmra.mxu0 %v124
    %v253 = vpop.f32.mrf.mxu0
    %v254 = vadd.f32 0.0, %v253
    %255 = vmatmul.f32.gmra.mxu0 %v127
    %v256 = vpop.f32.mrf.mxu0
    %v257 = vadd.f32 0.0, %v256
    %258 = vmatmul.f32.gmra.mxu0 %v130
    %v259 = vpop.f32.mrf.mxu0
    %v260 = vadd.f32 0.0, %v259
    %261 = vmatmul.f32.gmra.mxu0 %v133
    %v262 = vpop.f32.mrf.mxu0
    %v263 = vadd.f32 0.0, %v262
    %264 = vmatmul.f32.gmra.mxu0 %v136
    %v265 = vpop.f32.mrf.mxu0
    %v266 = vadd.f32 0.0, %v265
    %267 = vmatmul.f32.gmra.mxu0 %v139
    %v268 = vpop.f32.mrf.mxu0
    %v269 = vadd.f32 0.0, %v268
    %270 = vdwg.mxu0
    %v271 = vmul.f32 %v159, %v224
    %v272 = vmul.f32 %v162, %v227
    %v273 = vmul.f32 %v165, %v230
    %v274 = vmul.f32 %v168, %v233
    %v275 = vmul.f32 %v171, %v236
    %v276 = vmul.f32 %v174, %v239
    %v277 = vmul.f32 %v177, %v242
    %v278 = vmul.f32 %v180, %v245
    %v279 = vmul.f32 %v183, %v248
    %v280 = vmul.f32 %v186, %v251
    %v281 = vmul.f32 %v189, %v254
    %v282 = vmul.f32 %v192, %v257
    %v283 = vmul.f32 %v195, %v260
    %v284 = vmul.f32 %v198, %v263
    %v285 = vmul.f32 %v201, %v266
    %v286 = vmul.f32 %v204, %v269
    %v287 = vadd.f32 %v271, %v272
    %v288 = vadd.f32 %v287, %v273
    %v289 = vadd.f32 %v288, %v274
    %v290 = vadd.f32 %v289, %v275
    %v291 = vadd.f32 %v290, %v276
    %v292 = vadd.f32 %v291, %v277
    %v293 = vadd.f32 %v292, %v278
    %v294 = vadd.f32 %v293, %v279
    %v295 = vadd.f32 %v294, %v280
    %v296 = vadd.f32 %v295, %v281
    %v297 = vadd.f32 %v296, %v282
    %v298 = vadd.f32 %v297, %v283
    %v299 = vadd.f32 %v298, %v284
    %v300 = vadd.f32 %v299, %v285
    %v301 = vadd.f32 %v300, %v286
    %v302 = vrot.slane %v301, 4
    %v303 = vadd.f32 %v301, %v302
    %v304 = vrot.slane %v303, 2
    %v305 = vadd.f32 %v303, %v304
    %v306 = vrot.slane %v305, 1
    %v307 = vadd.f32 %v305, %v306
    %308 = vst [vmem:[#allocation2] sm:$0x1] %v307
    // Predicated region
    $region14: #{tpu_custom_call.1} parent=1 // pred_check
      _
    $region15: #{tpu_custom_call.1} parent=1 // pred_check_branch
      %310 = sbr.rel (0) target = $region17
    $region16: #{tpu_custom_call.1} parent=1 // pred_region
      %312 = vsyncadd [#allocation3], 0
      %s314 = sshll.u32 [#allocation2], 4
      %s315 = int_to_ptr.vmem [resolvable:$true] %s314
      %s316 = sshll.u32 %s3, 4
      %s317 = int_to_ptr.hbm [resolvable:$true] %s316
      %319 = dma.vmem_to_hbm [thread:$0]  %s315, 16, %s317, [#allocation3]
    $region17: #{tpu_custom_call.1} parent=1 // pred_fallthru
      _
    // Predicated region
    $region18: #{tpu_custom_call.1} parent=1 // pred_check
      _
    $region19: #{tpu_custom_call.1} parent=1 // pred_check_branch
      %321 = sbr.rel (0) target = $region21
    $region20: #{tpu_custom_call.1} parent=1 // pred_region
      %323 = dma.done [#allocation3], 16
    $region21: #{tpu_custom_call.1} parent=1 // pred_fallthru
      _
    %324 = vsyncpa [#allocation3], 1

</llo_original>
